<compile_context>
chip_gen: v5e
topology: v5e:2x2
jax: 0.10.0
libtpu: 0.0.40
codegen_flags: <defaults>
</compile_context>

<pallas_src>
import jax
import jax.numpy as jnp
from jax.experimental import pallas as pl
from jax.experimental.pallas import tpu as pltpu


_LANE = 128     # lane width (last dim alignment)
_SUB_B = 16     # bf16 sublane packing for the batch dim (also covers f32's 8)


def _round_up(x, m):
    return (x + m - 1) // m * m


def _pad2(a, rows, cols):
    pr = rows - a.shape[0]
    pc = cols - a.shape[1]
    if pr == 0 and pc == 0:
        return a
    return jnp.pad(a, ((0, pr), (0, pc)))


def _select_tiles(B, Din, Dout, max_tile_b, max_tile_d, max_tile_k, vmem_budget):
    """Pick MXU-friendly tiles that fit an explicit VMEM budget."""
    tile_b = min(max_tile_b, _round_up(B, _SUB_B))
    tile_k = min(max_tile_k, _round_up(Din, _LANE))
    d128 = _round_up(Dout, _LANE)
    # Prefer 256-aligned output-column tiles (v6e/v7x MXU is 2x256x256).
    tile_d = min(max_tile_d, _round_up(Dout, 256) if d128 >= 256 else d128)

    def est(tb, tk, td):
        # double-buffered bf16 x & W streams, double-buffered f32 output tile,
        # f32 accumulator scratch, plus the tiny scale/bias rows.
        return (2 * tb * tk * 2 + 2 * tk * td * 2 + 2 * tb * td * 4
                + tb * td * 4 + 4 * td * 4)

    def shrink(v, floor):
        nv = max(floor, _round_up(v // 2, floor))
        return nv if nv < v else v

    for _ in range(64):
        if est(tile_b, tile_k, tile_d) <= vmem_budget:
            break
        sizes = {"k": tile_k, "b": tile_b, "d": tile_d}
        changed = False
        for name in sorted(sizes, key=lambda n: sizes[n], reverse=True):
            if name == "k":
                nv = shrink(tile_k, _LANE)
                if nv < tile_k:
                    tile_k, changed = nv, True
                    break
            elif name == "b":
                nv = shrink(tile_b, _SUB_B)
                if nv < tile_b:
                    tile_b, changed = nv, True
                    break
            else:
                nv = shrink(tile_d, _LANE)
                if nv < tile_d:
                    tile_d, changed = nv, True
                    break
        if not changed:
            break
    return tile_b, tile_k, tile_d


# ---------------------------------------------------------------------------
# Kernel:  acc += x_tile @ Wt_tile  over K tiles;  store (acc*scale + bias).
# ---------------------------------------------------------------------------
def _matmul_scale_bias_kernel(x_ref, wt_ref, scale_ref, b_ref, o_ref, acc_ref):
    k = pl.program_id(2)

    @pl.when(k == 0)
    def _():
        acc_ref[...] = jnp.zeros_like(acc_ref)

    acc_ref[...] += jnp.dot(x_ref[...], wt_ref[...],
                            preferred_element_type=jnp.float32)

    @pl.when(k == pl.num_programs(2) - 1)
    def _():
        o_ref[...] = (acc_ref[...] * scale_ref[...] + b_ref[...]).astype(o_ref.dtype)


def concat_fc(t, x, W, b, *, max_tile_b=512, max_tile_d=512, max_tile_k=1024,
              vmem_budget_bytes=28 * 1024 * 1024):
    """Pallas-backed ConcatFC.forward(t, x). `t` is unused (parity with PyTorch).

    x: (B, Din) f32, W: (Dout, Din) f32 (PyTorch Linear layout), b: (Dout,) f32.
    """
    del t
    B, Din = x.shape
    Dout, _ = W.shape

    tile_b, tile_k, tile_d = _select_tiles(
        B, Din, Dout, max_tile_b, max_tile_d, max_tile_k, vmem_budget_bytes)

    brows_p = _round_up(B, tile_b)
    din_p = _round_up(Din, tile_k)
    dout_p = _round_up(Dout, tile_d)

    # Per-output-column scale, computed once in plain JAX (tiny (Dout,) vector;
    # no full-weight normalize/rewrite pass). Zero rows give inf -> clamp to 1.
    absrowsum = jnp.sum(jnp.abs(W.astype(jnp.float32)), axis=1)
    c = jnp.max(absrowsum)
    scale = jnp.minimum(jnp.float32(1.0), jax.nn.softplus(c) / absrowsum)

    # Single pad+cast per operand. bf16 streams for the MXU; padded columns of
    # Wt are zero -> contribute nothing; padded rows/cols are sliced off below.
    x_p = _pad2(x.astype(jnp.bfloat16), brows_p, din_p)
    wt_p = _pad2(W.astype(jnp.bfloat16).T, din_p, dout_p)
    scale_p = _pad2(scale[None, :], 1, dout_p)
    bias_p = _pad2(b.astype(jnp.float32)[None, :], 1, dout_p)

    n_b = brows_p // tile_b
    n_d = dout_p // tile_d
    n_k = din_p // tile_k

    # Put the larger operand on the OUTER parallel axis so it is read from HBM
    # exactly once; the smaller operand is the one re-streamed per outer step.
    batch_outer = brows_p >= dout_p
    if batch_outer:
        grid = (n_b, n_d, n_k)
        x_map = lambda i, j, k: (i, k)
        w_map = lambda i, j, k: (k, j)
        col_map = lambda i, j, k: (0, j)
        out_map = lambda i, j, k: (i, j)
    else:
        grid = (n_d, n_b, n_k)
        x_map = lambda j, i, k: (i, k)
        w_map = lambda j, i, k: (k, j)
        col_map = lambda j, i, k: (0, j)
        out_map = lambda j, i, k: (i, j)

    # TODO(synk): on v7x, when the whole problem fits one tile the (1,1,K) grid
    # leaves the second TensorCore idle; splitting the outer axis only pays off
    # for larger shapes, so it is not forced here.
    out_p = pl.pallas_call(
        _matmul_scale_bias_kernel,
        out_shape=jax.ShapeDtypeStruct((brows_p, dout_p), x.dtype),
        grid=grid,
        in_specs=[
            pl.BlockSpec((tile_b, tile_k), x_map),      # x stream (bf16)
            pl.BlockSpec((tile_k, tile_d), w_map),      # W.T stream (bf16)
            pl.BlockSpec((1, tile_d), col_map),         # scale row (f32)
            pl.BlockSpec((1, tile_d), col_map),         # bias row (f32)
        ],
        out_specs=pl.BlockSpec((tile_b, tile_d), out_map),
        scratch_shapes=[pltpu.VMEM((tile_b, tile_d), jnp.float32)],
        compiler_params=pltpu.CompilerParams(
            dimension_semantics=("parallel", "parallel", "arbitrary"),
            vmem_limit_bytes=48 * 1024 * 1024),
        cost_estimate=pl.CostEstimate(
            flops=2 * B * Din * Dout,
            transcendentals=0,
            bytes_accessed=(brows_p * din_p * 2 + din_p * dout_p * 2
                            + brows_p * dout_p * 4)),
    )(x_p, wt_p, scale_p, bias_p)

    return out_p[:B, :Dout]


def concat_fc_ref(t, x, W, b):
    """Pure-JAX (f32) reference for correctness checking."""
    del t
    absrowsum = jnp.sum(jnp.abs(W), axis=1)
    c = jnp.max(absrowsum)
    scale = jnp.minimum(1.0, jax.nn.softplus(c) / absrowsum)
    return x @ (W * scale[:, None]).T + b


def _run_case(key, batch, dim_in, dim_out):
    kx, kw, kb = jax.random.split(key, 3)
    bound = 1.0 / (dim_in ** 0.5)
    W = jax.random.uniform(kw, (dim_out, dim_in), jnp.float32, -bound, bound)
    b = jax.random.uniform(kb, (dim_out,), jnp.float32, -bound, bound)
    x = jax.random.normal(kx, (batch, dim_in), jnp.float32)
    t = jnp.float32(0.0)  # unused by forward

    out = jax.block_until_ready(concat_fc(t, x, W, b))
    ref = concat_fc_ref(t, x, W, b)
    assert out.shape == (batch, dim_out)
    # bf16 MXU operands with f32 accumulation -> relaxed tolerance vs pure f32.
    assert jnp.allclose(out, ref, atol=2e-2, rtol=2e-2), "mismatch vs reference"


if __name__ == "__main__":
    key = jax.random.PRNGKey(0)
    k1, k2 = jax.random.split(key)
    _run_case(k1, batch=8, dim_in=32, dim_out=32)    # aligned-ish small case
    _run_case(k2, batch=6, dim_in=20, dim_out=24)    # exercises the padding path
    print("KERNEL_OK")
</pallas_src>

<mosaic_0001>
module attributes {stable_mosaic.version = 11 : i64} {
  func.func @_matmul_scale_bias_kernel(%arg0: i32, %arg1: i32, %arg2: i32, %arg3: memref<16x128xbf16, #tpu.memory_space<vmem>>, %arg4: memref<128x128xbf16, #tpu.memory_space<vmem>>, %arg5: memref<1x128xf32, #tpu.memory_space<vmem>>, %arg6: memref<1x128xf32, #tpu.memory_space<vmem>>, %arg7: memref<16x128xf32, #tpu.memory_space<vmem>>, %arg8: memref<16x128xf32, #tpu.memory_space<vmem>>) attributes {dimension_semantics = [#tpu.dimension_semantics<parallel>, #tpu.dimension_semantics<parallel>, #tpu.dimension_semantics<arbitrary>], iteration_bounds = array<i64: 1, 1, 1>, scalar_prefetch = 0 : i64, scratch_operands = 1 : i64, tpu.core_type = #tpu.core_type<tc>, window_params = [{transform_indices = @transform_0, window_bounds = array<i64: 16, 128>}, {transform_indices = @transform_1, window_bounds = array<i64: 128, 128>}, {transform_indices = @transform_2, window_bounds = array<i64: 1, 128>}, {transform_indices = @transform_3, window_bounds = array<i64: 1, 128>}, {transform_indices = @transform_4, window_bounds = array<i64: 16, 128>}]} {
    %c0_i32 = arith.constant 0 : i32
    %0 = arith.cmpi eq, %arg2, %c0_i32 : i32
    %1 = arith.extui %0 : i1 to i32
    %c0_i32_0 = arith.constant 0 : i32
    %2 = arith.cmpi ne, %1, %c0_i32_0 : i32
    scf.if %2 {
      %cst_10 = arith.constant 0.000000e+00 : f32
      %12 = vector.broadcast %cst_10 : f32 to vector<16x128xf32>
      %c0_11 = arith.constant 0 : index
      %c0_12 = arith.constant 0 : index
      %13 = vector.load %arg8[%c0_11, %c0_12] : memref<16x128xf32, #tpu.memory_space<vmem>>, vector<16x128xf32>
      tpu.vector_store %arg8[%c0_11, %c0_12], %12 {strides = array<i32>} : memref<16x128xf32, #tpu.memory_space<vmem>>, vector<16x128xf32>,
    } else {
    }
    %c0 = arith.constant 0 : index
    %c0_1 = arith.constant 0 : index
    %3 = vector.load %arg8[%c0, %c0_1] : memref<16x128xf32, #tpu.memory_space<vmem>>, vector<16x128xf32>
    %c0_2 = arith.constant 0 : index
    %c0_3 = arith.constant 0 : index
    %4 = vector.load %arg3[%c0_2, %c0_3] : memref<16x128xbf16, #tpu.memory_space<vmem>>, vector<16x128xbf16>
    %c0_4 = arith.constant 0 : index
    %c0_5 = arith.constant 0 : index
    %5 = vector.load %arg4[%c0_4, %c0_5] : memref<128x128xbf16, #tpu.memory_space<vmem>>, vector<128x128xbf16>
    %cst = arith.constant dense<0.000000e+00> : vector<16x128xf32>
    %6 = tpu.matmul %4, %5, %cst {dimension_numbers = #tpu.dot_dimension_numbers<[1], [0], [0], [1], [0, 0, 1, 1], [], []>} : vector<16x128xbf16>, vector<128x128xbf16>, vector<16x128xf32> -> vector<16x128xf32>
    %7 = arith.addf %3, %6 : vector<16x128xf32>
    %c0_6 = arith.constant 0 : index
    %c0_7 = arith.constant 0 : index
    %8 = vector.load %arg8[%c0_6, %c0_7] : memref<16x128xf32, #tpu.memory_space<vmem>>, vector<16x128xf32>
    tpu.vector_store %arg8[%c0_6, %c0_7], %7 {strides = array<i32>} : memref<16x128xf32, #tpu.memory_space<vmem>>, vector<16x128xf32>,
    %c0_i32_8 = arith.constant 0 : i32
    %9 = arith.cmpi eq, %arg2, %c0_i32_8 : i32
    %10 = arith.extui %9 : i1 to i32
    %c0_i32_9 = arith.constant 0 : i32
    %11 = arith.cmpi ne, %10, %c0_i32_9 : i32
    scf.if %11 {
      %c0_10 = arith.constant 0 : index
      %c0_11 = arith.constant 0 : index
      %12 = vector.load %arg8[%c0_10, %c0_11] : memref<16x128xf32, #tpu.memory_space<vmem>>, vector<16x128xf32>
      %c0_12 = arith.constant 0 : index
      %c0_13 = arith.constant 0 : index
      %13 = vector.load %arg5[%c0_12, %c0_13] : memref<1x128xf32, #tpu.memory_space<vmem>>, vector<1x128xf32>
      %14 = vector.broadcast %13 : vector<1x128xf32> to vector<16x128xf32>
      %15 = arith.mulf %12, %14 : vector<16x128xf32>
      %c0_14 = arith.constant 0 : index
      %c0_15 = arith.constant 0 : index
      %16 = vector.load %arg6[%c0_14, %c0_15] : memref<1x128xf32, #tpu.memory_space<vmem>>, vector<1x128xf32>
      %17 = vector.broadcast %16 : vector<1x128xf32> to vector<16x128xf32>
      %18 = arith.addf %15, %17 : vector<16x128xf32>
      %c0_16 = arith.constant 0 : index
      %c0_17 = arith.constant 0 : index
      %19 = vector.load %arg7[%c0_16, %c0_17] : memref<16x128xf32, #tpu.memory_space<vmem>>, vector<16x128xf32>
      tpu.vector_store %arg7[%c0_16, %c0_17], %18 {strides = array<i32>} : memref<16x128xf32, #tpu.memory_space<vmem>>, vector<16x128xf32>,
    } else {
    }
    return
  }
  func.func @transform_0(%arg0: i32, %arg1: i32, %arg2: i32) -> (i32, i32) {
    %c0_i32 = arith.constant 0 : i32
    return %arg1, %arg2 : i32, i32
  }
  func.func @transform_1(%arg0: i32, %arg1: i32, %arg2: i32) -> (i32, i32) {
    %c0_i32 = arith.constant 0 : i32
    return %arg2, %arg0 : i32, i32
  }
  func.func @transform_2(%arg0: i32, %arg1: i32, %arg2: i32) -> (i32, i32) {
    %c0_i32 = arith.constant 0 : i32
    %c0_i32_0 = arith.constant 0 : i32
    return %c0_i32, %arg0 : i32, i32
  }
  func.func @transform_3(%arg0: i32, %arg1: i32, %arg2: i32) -> (i32, i32) {
    %c0_i32 = arith.constant 0 : i32
    %c0_i32_0 = arith.constant 0 : i32
    return %c0_i32, %arg0 : i32, i32
  }
  func.func @transform_4(%arg0: i32, %arg1: i32, %arg2: i32) -> (i32, i32) {
    %c0_i32 = arith.constant 0 : i32
    return %arg1, %arg0 : i32, i32
  }
}

</mosaic_0001>

<llo_original>
// kernel: tpu_custom_call.1
$region0: #{tpu_custom_call.1}
  #allocation0 [shape = 'u32[]', space=smem, size = 0x4, offset = 0x4, fixed_abs, tag = 'smem constant byte address 0x4 - core index']
  #allocation1 [shape = 'u32[72,128]{1,0:T(1,128)}', space=vmem, size = 0x9000, scoped, tag = 'internal scratch']
  #allocation2 [shape = 'f32[16,128]{1,0:T(8,128)}', space=vmem, size = 0x2000, scoped, tag = 'scratch operand']
  %s0 = inlined_call_operand.hbm [shape: bf16[16,128], index: 0, kind: input, shape index: {}]
  %s1 = inlined_call_operand.hbm [shape: bf16[128,128], index: 1, kind: input, shape index: {}]
  %s2 = inlined_call_operand.vmem [shape: f32[1,128], index: 2, kind: input, shape index: {}]
  %s3 = inlined_call_operand.vmem [shape: f32[1,128], index: 3, kind: input, shape index: {}]
  %s4 = inlined_call_operand.hbm [shape: f32[16,128], index: 4, kind: output, shape index: {}]
  %s5 = sld [smem:[#allocation0]]
  $region42: #{tpu_custom_call.1} parent=0
    _
  %s7 = ssub.s32 1, %s5
  %s8 = scalar_select 0, %s7, %s5
  $region1: #{tpu_custom_call.1} parent=0
    #allocation3 [shape = 'u8[4096]{0}', space=vmem, size = 0x1000, scoped, tag = 'input window, operand 0, single buffered']
    #allocation4 [shape = 's32[1]{0}', space=sflag, size = 0x4, scoped, tag = 'scoped memory for tpu_custom_call.1']
    #allocation5 [shape = 's32[1]{0}', space=sflag, size = 0x4, scoped, tag = 'scoped memory for tpu_custom_call.1']
    #allocation6 [shape = 'u8[32768]{0}', space=vmem, size = 0x8000, scoped, tag = 'input window, operand 1, single buffered']
    #allocation7 [shape = 's32[1]{0}', space=sflag, size = 0x4, scoped, tag = 'scoped memory for tpu_custom_call.1']
    #allocation8 [shape = 'u8[8192]{0}', space=vmem, size = 0x2000, scoped, tag = 'output window, operand 0, single buffered']
    %9 = vsyncpa [#allocation4], 0
    %10 = vsyncpa [#allocation7], 0
    %11 = vsyncpa [#allocation5], 0
    // Predicated region
    $region2: #{tpu_custom_call.1} parent=1 // pred_check
      _
    $region3: #{tpu_custom_call.1} parent=1 // pred_check_branch
      %13 = sbr.rel (0) target = $region5
    $region4: #{tpu_custom_call.1} parent=1 // pred_region
      %15 = vsyncadd [#allocation4], 0
      %s16 = sshll.u32 %s0, 4
      %s17 = int_to_ptr.hbm [resolvable:$true] %s16
      %s18 = sshll.u32 [#allocation3], 4
      %s19 = int_to_ptr.vmem [resolvable:$true] %s18
      %24 = dma.hbm_to_vmem [thread:$0]  %s17, 128, %s19, [#allocation4], 64, 64, 4
    $region5: #{tpu_custom_call.1} parent=1 // pred_fallthru
      _
    // Predicated region
    $region6: #{tpu_custom_call.1} parent=1 // pred_check
      _
    $region7: #{tpu_custom_call.1} parent=1 // pred_check_branch
      %26 = sbr.rel (0) target = $region9
    $region8: #{tpu_custom_call.1} parent=1 // pred_region
      %28 = vsyncadd [#allocation7], 0
      %s29 = sshll.u32 %s1, 4
      %s30 = int_to_ptr.hbm [resolvable:$true] %s29
      %s31 = sshll.u32 [#allocation6], 4
      %s32 = int_to_ptr.vmem [resolvable:$true] %s31
      %37 = dma.hbm_to_vmem [thread:$0]  %s30, 1024, %s32, [#allocation7], 64, 64, 4
    $region9: #{tpu_custom_call.1} parent=1 // pred_fallthru
      _
    // Predicated region
    $region10: #{tpu_custom_call.1} parent=1 // pred_check
      _
    $region11: #{tpu_custom_call.1} parent=1 // pred_check_branch
      %39 = sbr.rel (0) target = $region13
    $region12: #{tpu_custom_call.1} parent=1 // pred_region
      _
    $region13: #{tpu_custom_call.1} parent=1 // pred_fallthru
      _
    // Predicated region
    $region14: #{tpu_custom_call.1} parent=1 // pred_check
      _
    $region15: #{tpu_custom_call.1} parent=1 // pred_check_branch
      %41 = sbr.rel (0) target = $region17
    $region16: #{tpu_custom_call.1} parent=1 // pred_region
      _
    $region17: #{tpu_custom_call.1} parent=1 // pred_fallthru
      _
    // Predicated region
    $region18: #{tpu_custom_call.1} parent=1 // pred_check
      _
    $region19: #{tpu_custom_call.1} parent=1 // pred_check_branch
      %43 = sbr.rel (0) target = $region21
    $region20: #{tpu_custom_call.1} parent=1 // pred_region
      %45 = dma.done [#allocation4], 128
    $region21: #{tpu_custom_call.1} parent=1 // pred_fallthru
      _
    // Predicated region
    $region22: #{tpu_custom_call.1} parent=1 // pred_check
      _
    $region23: #{tpu_custom_call.1} parent=1 // pred_check_branch
      %47 = sbr.rel (0) target = $region25
    $region24: #{tpu_custom_call.1} parent=1 // pred_region
      %49 = dma.done [#allocation7], 1024
    $region25: #{tpu_custom_call.1} parent=1 // pred_fallthru
      _
    %p50 = scmp.eq.s32.totalorder 0, 0
    // Predicated region
    $region26: #{tpu_custom_call.1} parent=1 // pred_check
      %p51 = pneg %p50
    $region27: #{tpu_custom_call.1} parent=1 // pred_check_branch
      %53 = sbr.rel (%p51) target = $region29
    $region28: #{tpu_custom_call.1} parent=1 // pred_region
      %54 = vst [vmem:[#allocation2] sm:$0xff] 0.0
      %55 = vst [vmem:[#allocation2 + $0x8] sm:$0xff] 0.0
    $region29: #{tpu_custom_call.1} parent=1 // pred_fallthru
      _
    %v56 = vld [vmem:[#allocation2] sm:$0xff]
    %v57 = vld [vmem:[#allocation2 + $0x8] sm:$0xff]
    %v58 = vld [vmem:[#allocation3] sm:$0xf]
    %v59 = vld [vmem:[#allocation3 + $0x4] sm:$0xf]
    %v60 = vld [vmem:[#allocation6] sm:$0xf]
    %v61 = vld [vmem:[#allocation6 + $0x4] sm:$0xf]
    %v62 = vld [vmem:[#allocation6 + $0x8] sm:$0xf]
    %v63 = vld [vmem:[#allocation6 + $0xc] sm:$0xf]
    %v64 = vld [vmem:[#allocation6 + $0x10] sm:$0xf]
    %v65 = vld [vmem:[#allocation6 + $0x14] sm:$0xf]
    %v66 = vld [vmem:[#allocation6 + $0x18] sm:$0xf]
    %v67 = vld [vmem:[#allocation6 + $0x1c] sm:$0xf]
    %v68 = vld [vmem:[#allocation6 + $0x20] sm:$0xf]
    %v69 = vld [vmem:[#allocation6 + $0x24] sm:$0xf]
    %v70 = vld [vmem:[#allocation6 + $0x28] sm:$0xf]
    %v71 = vld [vmem:[#allocation6 + $0x2c] sm:$0xf]
    %v72 = vld [vmem:[#allocation6 + $0x30] sm:$0xf]
    %v73 = vld [vmem:[#allocation6 + $0x34] sm:$0xf]
    %v74 = vld [vmem:[#allocation6 + $0x38] sm:$0xf]
    %v75 = vld [vmem:[#allocation6 + $0x3c] sm:$0xf]
    %v78 = vunpack.c.l.b16 %v58
    %v79 = vunpack.c.l.b16 %v59
    %v80 = vpack.c.b16 %v79, %v78
    %v98 = vunpack.c.l.b16 %v60
    %v99 = vunpack.c.l.b16 %v61
    %v100 = vunpack.c.l.b16 %v62
    %v101 = vunpack.c.l.b16 %v63
    %v102 = vunpack.c.l.b16 %v64
    %v103 = vunpack.c.l.b16 %v65
    %v104 = vunpack.c.l.b16 %v66
    %v105 = vunpack.c.l.b16 %v67
    %v106 = vunpack.c.l.b16 %v68
    %v107 = vunpack.c.l.b16 %v69
    %v108 = vunpack.c.l.b16 %v70
    %v109 = vunpack.c.l.b16 %v71
    %v110 = vunpack.c.l.b16 %v72
    %v111 = vunpack.c.l.b16 %v73
    %v112 = vunpack.c.l.b16 %v74
    %v113 = vunpack.c.l.b16 %v75
    %v114 = vpack.c.b16 %v99, %v98
    %v115 = vpack.c.b16 %v101, %v100
    %v116 = vpack.c.b16 %v103, %v102
    %v117 = vpack.c.b16 %v105, %v104
    %v118 = vpack.c.b16 %v107, %v106
    %v119 = vpack.c.b16 %v109, %v108
    %v120 = vpack.c.b16 %v111, %v110
    %v121 = vpack.c.b16 %v113, %v112
    %130 = vmatpush.bf16.msra.mxu0 %v121
    %131 = vmatpush.bf16.msra.mxu0 %v120
    %132 = vmatpush.bf16.msra.mxu0 %v119
    %133 = vmatpush.bf16.msra.mxu0 %v118
    %134 = vmatpush.bf16.msra.mxu0 %v117
    %135 = vmatpush.bf16.msra.mxu0 %v116
    %136 = vmatpush.bf16.msra.mxu0 %v115
    %137 = vmatpush.bf16.msra.mxu0 %v114
    %138 = vmatmul.bf16.gmra.mxu0 %v80
    %v139 = vpop.f32.mrf.mxu0
    %v140 = vadd.f32 0.0, %v139
    %v141 = vpop.f32.mrf.mxu0
    %v142 = vadd.f32 0.0, %v141
    %143 = vdwg.mxu0
    %v144 = vadd.f32 %v56, %v140
    %v145 = vadd.f32 %v57, %v142
    %146 = vst [vmem:[#allocation2] sm:$0xff] %v144
    %147 = vst [vmem:[#allocation2 + $0x8] sm:$0xff] %v145
    // Predicated region
    $region30: #{tpu_custom_call.1} parent=1 // pred_check
      %p148 = pneg %p50
    $region31: #{tpu_custom_call.1} parent=1 // pred_check_branch
      %150 = sbr.rel (%p148) target = $region33
    $region32: #{tpu_custom_call.1} parent=1 // pred_region
      %v151 = vld [vmem:[#allocation2] sm:$0xff]
      %v152 = vld [vmem:[#allocation2 + $0x8] sm:$0xff]
      %v153 = vld [vmem:[%s2] sm:$0x1]
      %v155 = vperm.slane %v153, 0
      %v157 = vmul.f32 %v151, %v155
      %v158 = vmul.f32 %v152, %v155
      %v159 = vld [vmem:[%s3] sm:$0x1]
      %v161 = vperm.slane %v159, 0
      %v163 = vadd.f32 %v157, %v161
      %v164 = vadd.f32 %v158, %v161
      %165 = vst [vmem:[#allocation8] sm:$0xff] %v163
      %166 = vst [vmem:[#allocation8 + $0x8] sm:$0xff] %v164
    $region33: #{tpu_custom_call.1} parent=1 // pred_fallthru
      _
    // Predicated region
    $region34: #{tpu_custom_call.1} parent=1 // pred_check
      _
    $region35: #{tpu_custom_call.1} parent=1 // pred_check_branch
      %168 = sbr.rel (0) target = $region37
    $region36: #{tpu_custom_call.1} parent=1 // pred_region
      %170 = vsyncadd [#allocation5], 0
      %s171 = sshll.u32 [#allocation8], 4
      %s172 = int_to_ptr.vmem [resolvable:$true] %s171
      %s173 = sshll.u32 %s4, 4
      %s174 = int_to_ptr.hbm [resolvable:$true] %s173
      %179 = dma.vmem_to_hbm [thread:$0]  %s172, 256, %s174, [#allocation5], 128, 128, 8
    $region37: #{tpu_custom_call.1} parent=1 // pred_fallthru
      _
    // Predicated region
    $region38: #{tpu_custom_call.1} parent=1 // pred_check
      _
    $region39: #{tpu_custom_call.1} parent=1 // pred_check_branch
      %181 = sbr.rel (0) target = $region41
    $region40: #{tpu_custom_call.1} parent=1 // pred_region
      %183 = dma.done [#allocation5], 256
    $region41: #{tpu_custom_call.1} parent=1 // pred_fallthru
      _
    %184 = vsyncpa [#allocation4], 1
    %185 = vsyncpa [#allocation7], 1
    %186 = vsyncpa [#allocation5], 1

</llo_original>
